<compile_context>
chip_gen: v5e
topology: v5e:2x2
jax: 0.10.0
libtpu: 0.0.40
codegen_flags: <defaults>
</compile_context>

<pallas_src>
import functools

import jax
import jax.numpy as jnp
from jax.experimental import pallas as pl
from jax.experimental.pallas import tpu as pltpu


def _round_up(x, m):
    return (x + m - 1) // m * m


def _cdiv(a, b):
    return -(-a // b)


def _largest_divisor_tile(dim, cap, mult):
    """Largest multiple of `mult` that divides `dim`, at most `cap`."""
    t = min(cap, dim)
    t -= t % mult
    while t > mult:
        if dim % t == 0:
            return t
        t -= mult
    return mult


def _vmem_budget():
    """(tile working-set budget, max scoped-VMEM request), generation aware."""
    cap = None
    try:
        cap = int(getattr(pltpu.get_tpu_info(), "vmem_capacity_bytes", 0)) or None
    except Exception:
        cap = None
    if cap is None:
        cap = 64 * 1024 * 1024  # conservative fallback: v7x per-core VMEM
    cap = min(max(cap, 48 * 1024 * 1024), 128 * 1024 * 1024)
    # 3/4 of physical for the pipelined tile working set (96 MiB v5e/v6e,
    # 48 MiB v7x); 7/8 as the scoped-VMEM request cap (headroom for Mosaic
    # internal scratch and semaphores).
    return (cap * 3) // 4, (cap * 7) // 8


def _apply_activation(out, activation):
    if activation is None:
        return out
    if activation == "relu":
        return jnp.maximum(out, 0.0)
    if activation == "gelu":
        return jax.nn.gelu(out)
    if activation == "tanh":
        return jnp.tanh(out)
    if activation == "silu":
        return out * jax.nn.sigmoid(out)
    if activation == "sigmoid":
        return jax.nn.sigmoid(out)
    raise ValueError(f"unsupported activation: {activation}")


def _linear_kernel_single_k(x_ref, w_ref, b_ref, o_ref, *, activation):
    """Whole K in one block: no accumulator scratch, matmul + fused epilogue."""
    out = jnp.dot(x_ref[...], w_ref[...], preferred_element_type=jnp.float32)
    out = out + b_ref[...].astype(jnp.float32)
    o_ref[...] = _apply_activation(out, activation).astype(o_ref.dtype)


def _linear_kernel_multi_k(x_ref, w_ref, b_ref, o_ref, acc_ref, *,
                           activation, k_tail):
    """K tiled along the last ("arbitrary") grid axis; f32 VMEM accumulator.

    The bias is folded into the accumulator init (k == 0).  When K is not a
    multiple of tk, the garbage K-tail of the overhanging last x/W blocks is
    zeroed in-kernel (no wrapper-side jnp.pad of the activation tensor).
    """
    k = pl.program_id(2)
    nk = pl.num_programs(2)

    @pl.when(k == 0)
    def _():
        acc_ref[...] = jnp.broadcast_to(
            b_ref[...].astype(jnp.float32), acc_ref.shape)

    x = x_ref[...]
    w = w_ref[...]
    if k_tail:  # static: only emitted when K % tk != 0
        tk_blk = x.shape[-1]
        limit = jnp.where(k == nk - 1, k_tail, tk_blk)
        x_cols = jax.lax.broadcasted_iota(jnp.int32, x.shape, 1)
        w_rows = jax.lax.broadcasted_iota(jnp.int32, w.shape, 0)
        x = jnp.where(x_cols < limit, x, jnp.zeros_like(x))
        w = jnp.where(w_rows < limit, w, jnp.zeros_like(w))

    acc_ref[...] += jnp.dot(x, w, preferred_element_type=jnp.float32)

    @pl.when(k == nk - 1)
    def _():
        o_ref[...] = _apply_activation(acc_ref[...], activation).astype(o_ref.dtype)


def linear_projection(x, weight, bias=None, *, activation=None,
                      compute_dtype=None, tm=None, tn=None, tk=None):
    """y = act(x @ weight + bias) over the last axis of x.

    x:      [..., in_features]
    weight: [in_features, out_features]  (transpose of torch's [out, in])
    bias:   [out_features] or None (bias=False)
    compute_dtype: optional operand dtype for x/W.  jnp.bfloat16 is the
        intended fast path on v6e/v7x (~3x MXU throughput, half the DMA
        bytes); the accumulator stays f32 and the output keeps x.dtype.
    """
    *lead, K = x.shape
    Kw, N = weight.shape
    assert K == Kw, f"in_features mismatch: {K} vs {Kw}"
    M = 1
    for d in lead:
        M *= int(d)

    out_dtype = x.dtype
    if bias is None:
        bias = jnp.zeros((N,), dtype=weight.dtype)

    x2d = x.reshape(M, K)
    w2d = weight
    b2d = bias.reshape(1, N)
    if compute_dtype is not None:
        x2d = x2d.astype(compute_dtype)
        w2d = w2d.astype(compute_dtype)

    # ---- N: pad weight/bias (cheap) to a multiple of 128 -> lane-dense stores.
    N_pad = max(_round_up(N, 128), 128)
    if N_pad != N:
        w2d = jnp.pad(w2d, ((0, 0), (0, N_pad - N)))
        b2d = jnp.pad(b2d, ((0, 0), (0, N_pad - N)))

    xb = x2d.dtype.itemsize
    wb = w2d.dtype.itemsize
    ob = jnp.dtype(out_dtype).itemsize
    budget, limit_cap = _vmem_budget()

    # ---- tile selection (budget driven) ------------------------------------
    if tn is None:
        if N_pad <= 1536:
            tn = N_pad                      # full extent: gn==1 keeps W resident
        else:
            gran_n = 256 if N_pad % 256 == 0 else 128
            tn = _largest_divisor_tile(N_pad, cap=1024, mult=gran_n)
    assert tn == N_pad or tn % 128 == 0, "tn must be a multiple of 128"

    if tm is None:
        if M <= 1024:
            tm = M                          # full extent along rows
        else:
            tm = 512
            for cand in (1024, 896, 768, 640, 512, 384, 256):
                if M % cand == 0:
                    tm = cand
                    break
    assert tm == M or tm % 8 == 0, "tm must be a multiple of 8 (or == M)"

    def ws_single(tm_, tn_):
        return (2 * tm_ * K * xb + 2 * K * tn_ * wb + 2 * tn_ * wb
                + 2 * tm_ * tn_ * ob)

    def ws_multi(tm_, tn_, tk_):
        return (2 * tm_ * tk_ * xb + 2 * tk_ * tn_ * wb + 2 * tn_ * wb
                + 2 * tm_ * tn_ * ob + tm_ * tn_ * 4)

    single_k = False
    if tk is not None:
        if tk >= K:
            tk, single_k = K, True
        else:
            assert tk % 128 == 0, "tk must be a multiple of 128 (or >= K)"
    else:
        # Prefer a single full-extent K block: no accumulator scratch, no
        # per-step accumulator traffic, and no K padding/masking at all.
        for tm_try in dict.fromkeys((tm, 512, 384, 256, 128)):
            if tm_try > tm or tm_try < 1:
                continue
            if tm_try != M and tm_try % 8 != 0:
                continue
            if ws_single(tm_try, tn) <= budget:
                tm, tk, single_k = tm_try, K, True
                break
        if not single_k:
            gran = 256 if K > 256 else 128   # feed the 256-deep v6e/v7x MXU
            t = min(2048, _round_up(K, gran))
            t -= t % gran
            while t > gran and ws_multi(tm, tn, t) > budget:
                t -= gran
            tk = max(t, gran)
            while ws_multi(tm, tn, tk) > budget and tm > 256:
                tm = _round_up(max(tm // 2, 256), 8)
            while ws_multi(tm, tn, tk) > budget and tn > 128:
                tn = max(tn // 2 - (tn // 2) % 128, 128)

    gm = _cdiv(M, tm)
    gn = _cdiv(N_pad, tn)
    # v7x has 2 TensorCores: make sure the 'parallel' grid has >= 2 blocks.
    # (M-tail blocks read OOB x rows; that is safe because each output row
    #  depends only on its own x row and OOB output rows are masked on store.)
    if gm * gn == 1 and M >= 128:
        tm = _round_up(_cdiv(M, 2), 8)
        gm = _cdiv(M, tm)

    gk = 1 if single_k else _cdiv(K, tk)
    k_tail = 0 if single_k else (K % tk)

    ws = ws_single(tm, tn) if single_k else ws_multi(tm, tn, tk)
    vmem_limit = int(min(limit_cap, max(2 * ws, 32 * 1024 * 1024)))

    cost = pl.CostEstimate(
        flops=2 * M * N * K,
        transcendentals=(M * N if activation in ("gelu", "tanh", "silu", "sigmoid")
                         else 0),
        bytes_accessed=(M * K * xb + K * N_pad * wb + N_pad * wb + M * N_pad * ob),
    )

    if single_k:
        kernel = functools.partial(_linear_kernel_single_k, activation=activation)
        grid_spec = pltpu.PrefetchScalarGridSpec(
            num_scalar_prefetch=0,
            grid=(gm, gn),
            in_specs=[
                pl.BlockSpec((tm, K), lambda i, j: (i, 0)),   # x rows (streamed)
                pl.BlockSpec((K, tn), lambda i, j: (0, j)),   # W (resident if gn==1)
                pl.BlockSpec((1, tn), lambda i, j: (0, j)),   # bias
            ],
            out_specs=pl.BlockSpec((tm, tn), lambda i, j: (i, j)),
            scratch_shapes=(),
        )
        dims = ("parallel", "parallel")
    else:
        kernel = functools.partial(_linear_kernel_multi_k, activation=activation,
                                   k_tail=k_tail)
        grid_spec = pltpu.PrefetchScalarGridSpec(
            num_scalar_prefetch=0,
            grid=(gm, gn, gk),
            in_specs=[
                pl.BlockSpec((tm, tk), lambda i, j, k: (i, k)),
                pl.BlockSpec((tk, tn), lambda i, j, k: (k, j)),
                pl.BlockSpec((1, tn), lambda i, j, k: (0, j)),
            ],
            out_specs=pl.BlockSpec((tm, tn), lambda i, j, k: (i, j)),
            scratch_shapes=[pltpu.VMEM((tm, tn), jnp.float32)],
        )
        dims = ("parallel", "parallel", "arbitrary")

    out2d = pl.pallas_call(
        kernel,
        out_shape=jax.ShapeDtypeStruct((M, N_pad), out_dtype),
        grid_spec=grid_spec,
        compiler_params=pltpu.CompilerParams(
            dimension_semantics=dims,
            vmem_limit_bytes=vmem_limit,
        ),
        cost_estimate=cost,
    )(x2d, w2d, b2d)

    if N_pad != N:
        out2d = out2d[:, :N]
    return out2d.reshape(*lead, N)


def init_linear_params(key, in_features, out_features, dtype=jnp.float32):
    """Deterministic kaiming_uniform-style init (PyTorch nn.Linear default)."""
    kw, kb = jax.random.split(key)
    bound = 1.0 / jnp.sqrt(in_features)   # kaiming_uniform(a=sqrt(5)) bound
    weight = jax.random.uniform(
        kw, (in_features, out_features), dtype=jnp.float32,
        minval=-bound, maxval=bound).astype(dtype)
    bias = jax.random.uniform(
        kb, (out_features,), dtype=jnp.float32,
        minval=-bound, maxval=bound).astype(dtype)
    return weight, bias


# TODO(synk): weight_norm=True branch (reparametrize W = g * V/||V||) is not
# implemented in-kernel; it is off by default in the module.


if __name__ == "__main__":
    key = jax.random.PRNGKey(0)
    k1, k2, k3, k4, k5, k6 = jax.random.split(key, 6)

    # 1) Module defaults (bias=True, no activation), small shapes:
    #    batch=2, seq=8, in_features=32, out_features=64.
    batch, seq, in_f, out_f = 2, 8, 32, 64
    x_small = jax.random.normal(k1, (batch, seq, in_f), dtype=jnp.float32)
    w_s, b_s = init_linear_params(k2, in_f, out_f)
    y_small = jax.block_until_ready(linear_projection(x_small, w_s, b_s))
    ref_small = jnp.matmul(x_small, w_s, precision=jax.lax.Precision.HIGHEST) + b_s
    assert y_small.shape == (batch, seq, out_f)
    assert jnp.allclose(y_small, ref_small, atol=2e-2, rtol=2e-2)

    # 2) Larger single-K case: K=1300 as one full-extent block (no K padding,
    #    no accumulator scratch), M split into 2 row blocks (megacore) with a
    #    masked M tail (650 not a multiple of the row tile).
    M2, K2, N2 = 650, 1300, 384
    x_big = jax.random.normal(k3, (M2, K2), dtype=jnp.float32)
    w_b, b_b = init_linear_params(k4, K2, N2)
    y_big = jax.block_until_ready(linear_projection(x_big, w_b, b_b))
    ref_big = jnp.matmul(x_big, w_b, precision=jax.lax.Precision.HIGHEST) + b_b
    assert y_big.shape == (M2, N2)
    assert jnp.allclose(y_big, ref_big, atol=2e-2, rtol=2e-2)

    # 3) bf16-operand fast path (f32 accumulation, f32 output).
    y_bf16 = jax.block_until_ready(
        linear_projection(x_big, w_b, b_b, compute_dtype=jnp.bfloat16))
    assert y_bf16.dtype == jnp.float32
    assert jnp.allclose(y_bf16, ref_big, atol=7e-2, rtol=7e-2)

    # 4) Forced multi-K path: K tail (1300 % 256 != 0) masked in-kernel,
    #    N padding (200 -> 256) + output slice, fused relu epilogue.
    M4, K4, N4 = 100, 1300, 200
    x_mk = jax.random.normal(k5, (M4, K4), dtype=jnp.float32)
    w_m, b_m = init_linear_params(k6, K4, N4)
    y_mk = jax.block_until_ready(
        linear_projection(x_mk, w_m, b_m, activation="relu", tk=256))
    ref_mk = jnp.maximum(
        jnp.matmul(x_mk, w_m, precision=jax.lax.Precision.HIGHEST) + b_m, 0.0)
    assert y_mk.shape == (M4, N4)
    assert jnp.allclose(y_mk, ref_mk, atol=2e-2, rtol=2e-2)

    print("KERNEL_OK")
</pallas_src>

<mosaic_0001>
module attributes {stable_mosaic.version = 11 : i64} {
  func.func @_linear_kernel_single_k(%arg0: i32, %arg1: i32, %arg2: memref<16x32xf32, #tpu.memory_space<vmem>>, %arg3: memref<32x128xf32, #tpu.memory_space<vmem>>, %arg4: memref<1x128xf32, #tpu.memory_space<vmem>>, %arg5: memref<16x128xf32, #tpu.memory_space<vmem>>) attributes {dimension_semantics = [#tpu.dimension_semantics<parallel>, #tpu.dimension_semantics<parallel>], iteration_bounds = array<i64: 1, 1>, scalar_prefetch = 0 : i64, scratch_operands = 0 : i64, tpu.core_type = #tpu.core_type<tc>, window_params = [{transform_indices = @transform_0, window_bounds = array<i64: 16, 32>}, {transform_indices = @transform_1, window_bounds = array<i64: 32, 128>}, {transform_indices = @transform_2, window_bounds = array<i64: 1, 128>}, {transform_indices = @transform_3, window_bounds = array<i64: 16, 128>}]} {
    %c0 = arith.constant 0 : index
    %c0_0 = arith.constant 0 : index
    %0 = vector.load %arg2[%c0, %c0_0] : memref<16x32xf32, #tpu.memory_space<vmem>>, vector<16x32xf32>
    %c0_1 = arith.constant 0 : index
    %c0_2 = arith.constant 0 : index
    %1 = vector.load %arg3[%c0_1, %c0_2] : memref<32x128xf32, #tpu.memory_space<vmem>>, vector<32x128xf32>
    %cst = arith.constant dense<0.000000e+00> : vector<16x128xf32>
    %2 = tpu.matmul %0, %1, %cst {dimension_numbers = #tpu.dot_dimension_numbers<[1], [0], [0], [1], [0, 0, 1, 1], [], []>} : vector<16x32xf32>, vector<32x128xf32>, vector<16x128xf32> -> vector<16x128xf32>
    %c0_3 = arith.constant 0 : index
    %c0_4 = arith.constant 0 : index
    %3 = vector.load %arg4[%c0_3, %c0_4] : memref<1x128xf32, #tpu.memory_space<vmem>>, vector<1x128xf32>
    %4 = vector.broadcast %3 : vector<1x128xf32> to vector<16x128xf32>
    %5 = arith.addf %2, %4 : vector<16x128xf32>
    %c0_5 = arith.constant 0 : index
    %c0_6 = arith.constant 0 : index
    %6 = vector.load %arg5[%c0_5, %c0_6] : memref<16x128xf32, #tpu.memory_space<vmem>>, vector<16x128xf32>
    tpu.vector_store %arg5[%c0_5, %c0_6], %5 {strides = array<i32>} : memref<16x128xf32, #tpu.memory_space<vmem>>, vector<16x128xf32>,
    return
  }
  func.func @transform_0(%arg0: i32, %arg1: i32) -> (i32, i32) {
    %c0_i32 = arith.constant 0 : i32
    %c0_i32_0 = arith.constant 0 : i32
    return %arg0, %c0_i32 : i32, i32
  }
  func.func @transform_1(%arg0: i32, %arg1: i32) -> (i32, i32) {
    %c0_i32 = arith.constant 0 : i32
    %c0_i32_0 = arith.constant 0 : i32
    return %c0_i32, %arg1 : i32, i32
  }
  func.func @transform_2(%arg0: i32, %arg1: i32) -> (i32, i32) {
    %c0_i32 = arith.constant 0 : i32
    %c0_i32_0 = arith.constant 0 : i32
    return %c0_i32, %arg1 : i32, i32
  }
  func.func @transform_3(%arg0: i32, %arg1: i32) -> (i32, i32) {
    %c0_i32 = arith.constant 0 : i32
    return %arg0, %arg1 : i32, i32
  }
}

</mosaic_0001>

<llo_original>
// kernel: tpu_custom_call.1
$region0: #{tpu_custom_call.1}
  #allocation0 [shape = 'u32[]', space=smem, size = 0x4, offset = 0x4, fixed_abs, tag = 'smem constant byte address 0x4 - core index']
  #allocation1 [shape = 'u32[72,128]{1,0:T(1,128)}', space=vmem, size = 0x9000, scoped, tag = 'internal scratch']
  %s0 = inlined_call_operand.hbm [shape: f32[16,32], index: 0, kind: input, shape index: {}]
  %s1 = inlined_call_operand.hbm [shape: f32[32,128], index: 1, kind: input, shape index: {}]
  %s2 = inlined_call_operand.vmem [shape: f32[1,128], index: 2, kind: input, shape index: {}]
  %s3 = inlined_call_operand.hbm [shape: f32[16,128], index: 3, kind: output, shape index: {}]
  %s4 = sld [smem:[#allocation0]]
  $region30: #{tpu_custom_call.1} parent=0
    _
  %s6 = ssub.s32 1, %s4
  %s7 = scalar_select 0, %s6, %s4
  $region1: #{tpu_custom_call.1} parent=0
    #allocation2 [shape = 'u8[8192]{0}', space=vmem, size = 0x2000, scoped, tag = 'input window, operand 0, single buffered']
    #allocation3 [shape = 's32[1]{0}', space=sflag, size = 0x4, scoped, tag = 'scoped memory for tpu_custom_call.1']
    #allocation4 [shape = 's32[1]{0}', space=sflag, size = 0x4, scoped, tag = 'scoped memory for tpu_custom_call.1']
    #allocation5 [shape = 'u8[16384]{0}', space=vmem, size = 0x4000, scoped, tag = 'input window, operand 1, single buffered']
    #allocation6 [shape = 's32[1]{0}', space=sflag, size = 0x4, scoped, tag = 'scoped memory for tpu_custom_call.1']
    #allocation7 [shape = 'u8[8192]{0}', space=vmem, size = 0x2000, scoped, tag = 'output window, operand 0, single buffered']
    %8 = vsyncpa [#allocation3], 0
    %9 = vsyncpa [#allocation6], 0
    %10 = vsyncpa [#allocation4], 0
    // Predicated region
    $region2: #{tpu_custom_call.1} parent=1 // pred_check
      _
    $region3: #{tpu_custom_call.1} parent=1 // pred_check_branch
      %12 = sbr.rel (0) target = $region5
    $region4: #{tpu_custom_call.1} parent=1 // pred_region
      %14 = vsyncadd [#allocation3], 0
      %s15 = sshll.u32 %s0, 4
      %s16 = int_to_ptr.hbm [resolvable:$true] %s15
      %s17 = sshll.u32 [#allocation2], 4
      %s18 = int_to_ptr.vmem [resolvable:$true] %s17
      %23 = dma.hbm_to_vmem [thread:$0]  %s16, 256, %s18, [#allocation3], 128, 128, 8
    $region5: #{tpu_custom_call.1} parent=1 // pred_fallthru
      _
    // Predicated region
    $region6: #{tpu_custom_call.1} parent=1 // pred_check
      _
    $region7: #{tpu_custom_call.1} parent=1 // pred_check_branch
      %25 = sbr.rel (0) target = $region9
    $region8: #{tpu_custom_call.1} parent=1 // pred_region
      %27 = vsyncadd [#allocation6], 0
      %s28 = sshll.u32 %s1, 4
      %s29 = int_to_ptr.hbm [resolvable:$true] %s28
      %s30 = sshll.u32 [#allocation5], 4
      %s31 = int_to_ptr.vmem [resolvable:$true] %s30
      %36 = dma.hbm_to_vmem [thread:$0]  %s29, 512, %s31, [#allocation6], 128, 128, 8
    $region9: #{tpu_custom_call.1} parent=1 // pred_fallthru
      _
    // Predicated region
    $region10: #{tpu_custom_call.1} parent=1 // pred_check
      _
    $region11: #{tpu_custom_call.1} parent=1 // pred_check_branch
      %38 = sbr.rel (0) target = $region13
    $region12: #{tpu_custom_call.1} parent=1 // pred_region
      _
    $region13: #{tpu_custom_call.1} parent=1 // pred_fallthru
      _
    // Predicated region
    $region14: #{tpu_custom_call.1} parent=1 // pred_check
      _
    $region15: #{tpu_custom_call.1} parent=1 // pred_check_branch
      %40 = sbr.rel (0) target = $region17
    $region16: #{tpu_custom_call.1} parent=1 // pred_region
      %42 = dma.done [#allocation3], 256
    $region17: #{tpu_custom_call.1} parent=1 // pred_fallthru
      _
    // Predicated region
    $region18: #{tpu_custom_call.1} parent=1 // pred_check
      _
    $region19: #{tpu_custom_call.1} parent=1 // pred_check_branch
      %44 = sbr.rel (0) target = $region21
    $region20: #{tpu_custom_call.1} parent=1 // pred_region
      %46 = dma.done [#allocation6], 512
    $region21: #{tpu_custom_call.1} parent=1 // pred_fallthru
      _
    %v47 = vld [vmem:[#allocation2] sm:$0xff]
    %v48 = vld [vmem:[#allocation2 + $0x8] sm:$0xff]
    %v49 = vld [vmem:[#allocation5] sm:$0xff]
    %v50 = vld [vmem:[#allocation5 + $0x8] sm:$0xff]
    %v51 = vld [vmem:[#allocation5 + $0x10] sm:$0xff]
    %v52 = vld [vmem:[#allocation5 + $0x18] sm:$0xff]
    %v53 = vld [vmem:[%s2] sm:$0x1]
    %v55 = vperm.slane %v53, 0
    %vm57 = vcmask 261120
    %v59 = vsel %vm57, %v47, 0
    %v62 = vsel %vm57, %v48, 0
    %64 = vmatpush.msra.mxu0 0.0
    %65 = vmatpush.msra.mxu0 0.0
    %66 = vmatpush.msra.mxu0 0.0
    %67 = vmatpush.msra.mxu0 0.0
    %68 = vmatpush.msra.mxu0 0.0
    %69 = vmatpush.msra.mxu0 0.0
    %70 = vmatpush.msra.mxu0 0.0
    %71 = vmatpush.msra.mxu0 0.0
    %72 = vmatpush.msra.mxu0 0.0
    %73 = vmatpush.msra.mxu0 0.0
    %74 = vmatpush.msra.mxu0 0.0
    %75 = vmatpush.msra.mxu0 0.0
    %76 = vmatpush.msra.mxu0 %v52
    %77 = vmatpush.msra.mxu0 %v51
    %78 = vmatpush.msra.mxu0 %v50
    %79 = vmatpush.msra.mxu0 %v49
    %80 = vmatmul.f32.gmra.mxu0 %v59
    %v81 = vpop.f32.mrf.mxu0
    %v82 = vadd.f32 %v55, %v81
    %83 = vmatmul.f32.gmra.mxu0 %v62
    %v84 = vpop.f32.mrf.mxu0
    %v85 = vadd.f32 %v55, %v84
    %86 = vdwg.mxu0
    %87 = vst [vmem:[#allocation7] sm:$0xff] %v82
    %88 = vst [vmem:[#allocation7 + $0x8] sm:$0xff] %v85
    // Predicated region
    $region22: #{tpu_custom_call.1} parent=1 // pred_check
      _
    $region23: #{tpu_custom_call.1} parent=1 // pred_check_branch
      %90 = sbr.rel (0) target = $region25
    $region24: #{tpu_custom_call.1} parent=1 // pred_region
      %92 = vsyncadd [#allocation4], 0
      %s93 = sshll.u32 [#allocation7], 4
      %s94 = int_to_ptr.vmem [resolvable:$true] %s93
      %s95 = sshll.u32 %s3, 4
      %s96 = int_to_ptr.hbm [resolvable:$true] %s95
      %101 = dma.vmem_to_hbm [thread:$0]  %s94, 256, %s96, [#allocation4], 128, 128, 8
    $region25: #{tpu_custom_call.1} parent=1 // pred_fallthru
      _
    // Predicated region
    $region26: #{tpu_custom_call.1} parent=1 // pred_check
      _
    $region27: #{tpu_custom_call.1} parent=1 // pred_check_branch
      %103 = sbr.rel (0) target = $region29
    $region28: #{tpu_custom_call.1} parent=1 // pred_region
      %105 = dma.done [#allocation4], 256
    $region29: #{tpu_custom_call.1} parent=1 // pred_fallthru
      _
    %106 = vsyncpa [#allocation3], 1
    %107 = vsyncpa [#allocation6], 1
    %108 = vsyncpa [#allocation4], 1

</llo_original>
